<compile_context>
chip_gen: v6e
topology: v6e:2x2x1
jax: 0.10.0
libtpu: 0.0.40
codegen_flags: <defaults>
</compile_context>

<pallas_src>
import math
from functools import partial

import numpy as np
import jax
import jax.numpy as jnp
from jax.experimental import pallas as pl
from jax.experimental.pallas import tpu as pltpu

# Plain Python float: kernels must not capture jnp array constants.
_NEG_INF = -1.0e30


# ----------------------------- small helpers -------------------------------------------------
def _round_up(x, m):
    return ((x + m - 1) // m) * m


def _sublane(dtype):
    return {4: 8, 2: 16, 1: 32}.get(jnp.dtype(dtype).itemsize, 8)


def _tile_bytes(shape, dtype):
    """VMEM bytes of one buffer, including (sublane, lane) padding of the last two dims."""
    dims = list(shape)
    if dims:
        dims[-1] = _round_up(dims[-1], 128)
    if len(dims) >= 2:
        dims[-2] = _round_up(dims[-2], _sublane(dtype))
    n = 1
    for d in dims:
        n *= int(d)
    return n * jnp.dtype(dtype).itemsize


def _vmem_limit_bytes():
    """Generation-aware VMEM limit: ~3/4 of physical capacity, capped at 96 MiB
    (~96 MiB on v5e/v6e's 128 MiB, ~48 MiB on v7x's 64 MiB, 48 MiB fallback if unknown)."""
    try:
        cap = getattr(pltpu.get_tpu_info(), "vmem_capacity_bytes", None)
    except Exception:
        cap = None
    if not cap:
        cap = 64 * 1024 * 1024
    return min((int(cap) * 3) // 4, 96 * 1024 * 1024)


def _buffered_spec(block_shape, index_map, buffers):
    """BlockSpec with requested pipeline depth (Buffered(3) hides the K/V DMA of the HBM-bound
    context kernel on short grids); falls back to default double-buffering if unsupported."""
    buffered = getattr(pl, "Buffered", None)
    if buffers > 2 and buffered is not None:
        try:
            return pl.BlockSpec(block_shape, index_map, pipeline_mode=buffered(buffers))
        except TypeError:
            pass
    return pl.BlockSpec(block_shape, index_map)


def _choose_key_block(s):
    """Key-block size for kernel 1's online reduction: full S when small, else a 128-aligned
    divisor of S around 512 so the (L, S_blk) f32 score tile stays comfortably in VMEM."""
    if s <= 512 or s % 128 != 0:
        return s
    blk = 512
    while s % blk != 0:
        blk -= 128
    return blk


def _choose_head_block(bh, requested, per_head_bytes, shared_bytes, budget):
    """Head-batch G: prefer >= 8 grid steps (>= 4 per v7x TensorCore) so DMA overlaps compute on
    the HBM-bound kernels; stop growing G once a block is ~1 MiB (per-step cost ~0.35us)."""
    if requested is not None:
        if bh % requested:
            raise ValueError(f"head_block={requested} must divide B*H={bh}")
        return requested
    divisors = [g for g in range(1, bh + 1) if bh % g == 0]
    feasible = [g for g in divisors if g * per_head_bytes + shared_bytes <= budget] or [1]
    target_steps = min(8, bh)
    deep = [g for g in feasible if bh // g >= target_steps]
    if deep:
        big_enough = [g for g in deep if g * per_head_bytes >= (1 << 20)]
        return min(big_enough) if big_enough else max(deep)
    return max(feasible)


def _kernel1_bytes_per_head(L, s_blk, D, cdt):
    return (2 * _tile_bytes((L, D), cdt)                    # Q block (double-buffered)
            + 2 * _tile_bytes((s_blk, D), cdt)              # K block
            + 3 * _tile_bytes((L, s_blk), jnp.float32)      # qk + masked + weighted (live f32)
            + 2 * _tile_bytes((1, L), jnp.float32)          # M output block
            + 2 * _tile_bytes((1, L), jnp.float32))         # running max / weighted-sum scratch


def _kernel2_bytes_per_head(S, D, u_pad, cdt, odt, kv_buffers):
    return (2 * _tile_bytes((u_pad, D), cdt)                # top-k queries
            + 2 * kv_buffers * _tile_bytes((S, D), cdt)     # K and V (Buffered(kv_buffers))
            + 2 * _tile_bytes((1, u_pad), jnp.int32)        # indices
            + 2 * _tile_bytes((S, D), odt)                  # ctx output block
            + 3 * _tile_bytes((u_pad, S), jnp.float32)      # scores / exp / one-hot
            + _tile_bytes((u_pad, D), jnp.float32)          # attn @ V
            + 2 * _tile_bytes((S, D), jnp.float32))         # cumsum ctx + scattered


# --------------- Kernel 1: sparsity measure M, online over key blocks ------------------------
def _sample_m_kernel(q_ref, k_ref, cnt_ref, m_ref, max_acc, sum_acc, *, inv_len):
    # q_ref:   (G, L, D)     queries (compute dtype)
    # k_ref:   (G, S_blk, D) key block
    # cnt_ref: (L, S_blk)    int8 multiplicity of key s in query l's random sample (shared)
    # m_ref:   (1, G, L)     f32 sparsity measure M (lane-dense), written on last key step
    # max_acc / sum_acc: (G, L) f32 running max of sampled scores / running weighted sum
    kb = pl.program_id(1)

    @pl.when(kb == 0)
    def _():
        max_acc[...] = jnp.full_like(max_acc, _NEG_INF)
        sum_acc[...] = jnp.zeros_like(sum_acc)

    q = q_ref[...]
    k = k_ref[...]
    cnt = cnt_ref[...].astype(jnp.float32)        # int8 -> f32 in-register

    # Full L x S_blk scores on the MXU; the sampled-column "gather" is done in-register via the
    # multiplicity matrix, so no (L, u, D) gathered-key tensor ever touches HBM.
    qk = jnp.einsum('gld,gsd->gls', q, k, preferred_element_type=jnp.float32)   # (G, L, S_blk)
    sampled = cnt[None] > 0.0
    max_acc[...] = jnp.maximum(max_acc[...],
                               jnp.max(jnp.where(sampled, qk, _NEG_INF), axis=-1))
    sum_acc[...] = sum_acc[...] + jnp.sum(qk * cnt[None], axis=-1)              # dups counted
    # TODO(synk): on v6e, if a bundle dump shows the XLU (not the MXU) saturating here, move the
    # weighted sum to the MXU (kw = cnt @ K, then a lane reduce over D) and/or quantize Q/K for
    # this ranking-only pass (int8 on v5e/v6e, fp8 on v7x).

    @pl.when(kb == pl.num_programs(1) - 1)
    def _():
        m_ref[0] = max_acc[...] - sum_acc[...] * inv_len


# --------------- Kernel 2: masked softmax attn + cumsum context + fused top-k scatter ---------
def _attn_update_kernel(qr_ref, k_ref, v_ref, idx_ref, tri_ref, ctx_ref, *, scale, n_top):
    # qr_ref:  (G, Up, D)  top-k queries (Up = n_top rounded to a sublane multiple)
    # k_ref:   (G, S, D)   keys
    # v_ref:   (G, S, D)   values
    # idx_ref: (G, 1, Up)  int32 top-k query positions (padded entries repeat a valid index)
    # tri_ref: (D, D)      upper-triangular ones (hoisted constant)
    # ctx_ref: (G, S, D)   output context (scatter fused in-kernel, written once)
    qr = qr_ref[...]
    k = k_ref[...]
    v = v_ref[...]
    idx = idx_ref[:, 0, :]                                   # (G, Up)
    tri = tri_ref[...]

    g, up, _ = qr.shape
    s = k.shape[1]

    scores = jnp.einsum('gud,gsd->gus', qr, k,
                        preferred_element_type=jnp.float32) * scale             # (G, Up, S)
    col = jax.lax.broadcasted_iota(jnp.int32, (g, up, s), 2)
    causal = col > idx[:, :, None]                           # Informer ProbMask rows
    scores = jnp.where(causal, _NEG_INF, scores)

    # softmax over keys in f32 (exact divide: parity with the torch reference; the denominator
    # is only O(G*Up) elements, negligible next to the matmuls)
    row_max = jnp.max(scores, axis=-1, keepdims=True)
    e = jnp.exp(scores - row_max)
    attn = e / jnp.sum(e, axis=-1, keepdims=True)

    upd = jnp.einsum('gus,gsd->gud', attn.astype(v.dtype), v,
                     preferred_element_type=jnp.float32)                        # (G, Up, D)

    # fused scatter: context[..., index, :] = attn @ V, via a one-hot matmul (top-k idx distinct)
    row_valid = jax.lax.broadcasted_iota(jnp.int32, (1, up, 1), 1) < n_top
    onehot = ((col == idx[:, :, None]) & row_valid).astype(jnp.float32)         # (G, Up, S)
    scattered = jnp.einsum('gus,gud->gsd', onehot, upd,
                           preferred_element_type=jnp.float32)                  # (G, S, D)
    selected = jnp.sum(onehot, axis=1)                                          # (G, S) in {0,1}

    # initial context = V.cumsum(dim=-1) (feature-dim cumsum, exactly as in the torch code).
    # Fold the (1 - selected) row mask into V BEFORE the cumsum matmul: selected rows contribute
    # zero, so the result is identical but we skip a full (G,S,D) f32 blend at the store phase.
    v_masked = v * (1.0 - selected[:, :, None]).astype(v.dtype)
    ctx = jnp.einsum('gsd,de->gse', v_masked, tri, preferred_element_type=jnp.float32)
    ctx_ref[...] = (ctx + scattered).astype(ctx_ref.dtype)


# --------------------- Wrapper (glue in plain JAX) --------------------------------------------
def prob_attention(queries, keys, values, attn_mask=None, *, factor=5, scale=None,
                   mask_flag=True, sample_idx=None, compute_dtype=jnp.bfloat16,
                   out_dtype=None, head_block=None):
    """ProbAttention.forward.  queries/keys/values: (B,L,H,D)/(B,S,H,D)/(B,S,H,D).
    Returns the context as (B, H, L, D), matching the torch module.

    compute_dtype: dtype fed to the MXU matmuls (bf16 is native on v6e/v7x); softmax math is f32.
    out_dtype: context dtype written to HBM.  Defaults to bf16 when compute_dtype is bf16 (the
      context kernel is HBM-write bound, so this halves its writeback), else the input dtype.
    NOTE: bf16 matmuls in kernel 1 can shift the top-k query selection slightly relative to an
    f32/torch reference; only the f32 path is numerically asserted in __main__.
    """
    del attn_mask  # unused by the torch forward (ProbMask is built internally)
    B, L, H, D = queries.shape
    _, S, _, _ = keys.shape

    if not mask_flag:
        # TODO(synk): mask_flag=False path (V.sum broadcast init, no ProbMask) not implemented.
        raise NotImplementedError("only the default mask_flag=True path is implemented")
    assert L == S, "mask_flag=True path requires L_Q == L_V (torch assert)"

    compute_dtype = jnp.dtype(compute_dtype)
    if out_dtype is None:
        out_dtype = jnp.bfloat16 if compute_dtype == jnp.dtype(jnp.bfloat16) else queries.dtype
    out_dtype = jnp.dtype(out_dtype)

    # torch `.view(B, H, L, -1)` is a reshape, not a transpose.
    Q = queries.reshape(B, H, L, D)
    K = keys.reshape(B, H, S, D)
    V = values.reshape(B, H, S, D)

    U = factor * int(np.ceil(np.log(S)))   # n_top
    u = factor * int(np.ceil(np.log(L)))   # sample_k
    assert 1 <= U <= L and 1 <= u <= 127   # 127: multiplicities stored as int8
    U_pad = _round_up(U, _sublane(compute_dtype))     # pad top-k rows to full sublane groups

    if sample_idx is None:
        sample_idx = jax.random.randint(jax.random.PRNGKey(0), (L, u), 0, S)
    sample_idx = sample_idx.astype(jnp.int32)

    # Multiplicity of each key in each query's random sample (shared across heads), as int8:
    # the only O(L*S) side input of kernel 1, 4x smaller in HBM and VMEM than f32.
    cnt = jnp.zeros((L, S), jnp.int8).at[jnp.arange(L)[:, None], sample_idx].add(1)

    BH = B * H
    Qc = Q.astype(compute_dtype).reshape(BH, L, D)
    Kc = K.astype(compute_dtype).reshape(BH, S, D)
    Vc = V.astype(compute_dtype).reshape(BH, S, D)

    S_blk = _choose_key_block(S)
    n_kb = S // S_blk

    vmem_limit = _vmem_limit_bytes()
    budget = vmem_limit // 2         # headroom for Mosaic internal scratch / regalloc spills

    per_head = max(_kernel1_bytes_per_head(L, S_blk, D, compute_dtype),
                   _kernel2_bytes_per_head(S, D, U_pad, compute_dtype, out_dtype, 2))
    shared = (2 * _tile_bytes((L, S_blk), jnp.int8)         # cnt block
              + _tile_bytes((D, D), compute_dtype))         # triu block
    G = _choose_head_block(BH, head_block, per_head, shared, budget)
    n_blocks = BH // G
    # Spend leftover VMEM on deeper K/V buffering for kernel 2 rather than on a bigger G.
    kv_buffers = 3 if (G * _kernel2_bytes_per_head(S, D, U_pad, compute_dtype, out_dtype, 3)
                       + shared <= budget) else 2

    # ---- kernel 1: sparsity measure M (flash-style online reduction over key blocks) ----
    M = pl.pallas_call(
        partial(_sample_m_kernel, inv_len=1.0 / S),
        out_shape=jax.ShapeDtypeStruct((n_blocks, G, L), jnp.float32),
        grid=(n_blocks, n_kb),
        in_specs=[pl.BlockSpec((G, L, D), lambda i, k: (i, 0, 0)),
                  pl.BlockSpec((G, S_blk, D), lambda i, k: (i, k, 0)),
                  pl.BlockSpec((L, S_blk), lambda i, k: (0, k))],
        out_specs=pl.BlockSpec((1, G, L), lambda i, k: (i, 0, 0)),
        scratch_shapes=[pltpu.VMEM((G, L), jnp.float32),
                        pltpu.VMEM((G, L), jnp.float32)],
        compiler_params=pltpu.CompilerParams(
            dimension_semantics=("parallel", "arbitrary"),
            vmem_limit_bytes=vmem_limit),
    )(Qc, Kc, cnt)
    M = M.reshape(B, H, L)

    # top-U queries (torch.topk(sorted=False) -> set semantics; the same indices drive both the
    # gather and the in-kernel scatter, so ordering is irrelevant).
    _, index = jax.lax.top_k(M, U)                                  # (B, H, U)
    if U_pad > U:
        pad = jnp.broadcast_to(index[..., :1], (B, H, U_pad - U))   # valid rows; masked in-kernel
        index_p = jnp.concatenate([index, pad], axis=-1)
    else:
        index_p = index

    Q_reduce = jnp.take_along_axis(Q, index_p[..., None], axis=2)   # (B, H, U_pad, D)
    Qr = Q_reduce.astype(compute_dtype).reshape(BH, U_pad, D)
    idx_f = index_p.reshape(BH, 1, U_pad).astype(jnp.int32)

    sc = float(scale) if scale is not None else 1.0 / math.sqrt(D)
    tri = jnp.triu(jnp.ones((D, D), compute_dtype))                 # tri[d, e] = 1 if d <= e

    # ---- kernel 2: masked softmax attention + feature-cumsum context + fused top-k scatter ----
    context = pl.pallas_call(
        partial(_attn_update_kernel, scale=sc, n_top=U),
        out_shape=jax.ShapeDtypeStruct((BH, S, D), out_dtype),
        grid=(n_blocks,),
        in_specs=[pl.BlockSpec((G, U_pad, D), lambda i: (i, 0, 0)),
                  _buffered_spec((G, S, D), lambda i: (i, 0, 0), kv_buffers),
                  _buffered_spec((G, S, D), lambda i: (i, 0, 0), kv_buffers),
                  pl.BlockSpec((G, 1, U_pad), lambda i: (i, 0, 0)),
                  pl.BlockSpec((D, D), lambda i: (0, 0))],
        out_specs=pl.BlockSpec((G, S, D), lambda i: (i, 0, 0)),
        compiler_params=pltpu.CompilerParams(
            dimension_semantics=("parallel",),
            vmem_limit_bytes=vmem_limit),
    )(Qr, Kc, Vc, idx_f, tri)

    return context.reshape(B, H, L, D)


# --------------------- Pure-JAX reference (same semantics) ------------------------------------
def prob_attention_ref(queries, keys, values, sample_idx, *, factor=5, scale=None):
    B, L, H, D = queries.shape
    S = keys.shape[1]
    Q = queries.reshape(B, H, L, D)
    K = keys.reshape(B, H, S, D)
    V = values.reshape(B, H, S, D)
    U = factor * int(np.ceil(np.log(S)))
    K_sample = jnp.take(K, sample_idx, axis=2)                       # (B,H,L,u,D)
    QK_sample = jnp.einsum('bhld,bhlkd->bhlk', Q, K_sample)
    M = QK_sample.max(-1) - QK_sample.sum(-1) / S
    _, index = jax.lax.top_k(M, U)
    Q_reduce = jnp.take_along_axis(Q, index[..., None], axis=2)
    scores = jnp.einsum('bhud,bhsd->bhus', Q_reduce, K)
    sc = scale if scale is not None else 1.0 / math.sqrt(D)
    scores = scores * sc
    mask = jnp.arange(S)[None, None, None, :] > index[..., None]
    scores = jnp.where(mask, -jnp.inf, scores)
    attn = jax.nn.softmax(scores, axis=-1)
    ctx = jnp.cumsum(V, axis=-1)
    upd = jnp.einsum('bhus,bhsd->bhud', attn, V)
    b = jnp.arange(B)[:, None, None]
    h = jnp.arange(H)[None, :, None]
    return ctx.at[b, h, index, :].set(upd)


if __name__ == "__main__":
    key = jax.random.PRNGKey(0)
    kq, kk, kv, ks = jax.random.split(key, 4)

    B, L, H, D = 2, 16, 4, 8
    S = 16
    factor = 5
    u = factor * int(np.ceil(np.log(L)))     # sample_k = 15 for L=16

    queries = jax.random.normal(kq, (B, L, H, D), jnp.float32)
    keys_ = jax.random.normal(kk, (B, S, H, D), jnp.float32)
    values = jax.random.normal(kv, (B, S, H, D), jnp.float32)
    sample_idx = jax.random.randint(ks, (L, u), 0, S)

    ref = prob_attention_ref(queries, keys_, values, sample_idx, factor=factor)

    # f32 compute path: numerical check against the pure-JAX reference.
    out = prob_attention(queries, keys_, values, None, factor=factor,
                         sample_idx=sample_idx, compute_dtype=jnp.float32)
    out = jax.block_until_ready(out)
    assert out.shape == (B, H, L, D)
    np.testing.assert_allclose(np.asarray(out), np.asarray(ref), rtol=1e-2, atol=1e-2)

    # default path (bf16 MXU matmuls, bf16 context writeback): shape + finiteness smoke check.
    out_bf = prob_attention(queries, keys_, values, None, factor=factor, sample_idx=sample_idx)
    out_bf = jax.block_until_ready(out_bf)
    assert out_bf.shape == (B, H, L, D)
    assert out_bf.dtype == jnp.bfloat16
    assert bool(jnp.all(jnp.isfinite(out_bf.astype(jnp.float32))))

    print("KERNEL_OK")
</pallas_src>

<mosaic_0001>
module attributes {stable_mosaic.version = 11 : i64} {
  func.func @_sample_m_kernel(%arg0: i32, %arg1: i32, %arg2: memref<1x16x8xf32, #tpu.memory_space<vmem>>, %arg3: memref<1x16x8xf32, #tpu.memory_space<vmem>>, %arg4: memref<16x16xi8, #tpu.memory_space<vmem>>, %arg5: memref<1x1x16xf32, #tpu.memory_space<vmem>>, %arg6: memref<1x16xf32, #tpu.memory_space<vmem>>, %arg7: memref<1x16xf32, #tpu.memory_space<vmem>>) attributes {dimension_semantics = [#tpu.dimension_semantics<parallel>, #tpu.dimension_semantics<arbitrary>], iteration_bounds = array<i64: 8, 1>, scalar_prefetch = 0 : i64, scratch_operands = 2 : i64, tpu.core_type = #tpu.core_type<tc>, window_params = [{transform_indices = @transform_0, window_bounds = array<i64: 1, 16, 8>}, {transform_indices = @transform_1, window_bounds = array<i64: 1, 16, 8>}, {transform_indices = @transform_2, window_bounds = array<i64: 16, 16>}, {transform_indices = @transform_3, window_bounds = array<i64: 1, 1, 16>}]} {
    %c0_i32 = arith.constant 0 : i32
    %0 = arith.cmpi eq, %arg1, %c0_i32 : i32
    %1 = arith.extui %0 : i1 to i32
    %c0_i32_0 = arith.constant 0 : i32
    %2 = arith.cmpi ne, %1, %c0_i32_0 : i32
    scf.if %2 {
      %cst_22 = arith.constant -1.000000e+30 : f32
      %26 = vector.broadcast %cst_22 : f32 to vector<1x16xf32>
      %c0_23 = arith.constant 0 : index
      %c0_24 = arith.constant 0 : index
      %27 = vector.load %arg6[%c0_23, %c0_24] : memref<1x16xf32, #tpu.memory_space<vmem>>, vector<1x16xf32>
      tpu.vector_store %arg6[%c0_23, %c0_24], %26 {strides = array<i32>} : memref<1x16xf32, #tpu.memory_space<vmem>>, vector<1x16xf32>,
      %cst_25 = arith.constant 0.000000e+00 : f32
      %28 = vector.broadcast %cst_25 : f32 to vector<1x16xf32>
      %c0_26 = arith.constant 0 : index
      %c0_27 = arith.constant 0 : index
      %29 = vector.load %arg7[%c0_26, %c0_27] : memref<1x16xf32, #tpu.memory_space<vmem>>, vector<1x16xf32>
      tpu.vector_store %arg7[%c0_26, %c0_27], %28 {strides = array<i32>} : memref<1x16xf32, #tpu.memory_space<vmem>>, vector<1x16xf32>,
    } else {
    }
    %c0 = arith.constant 0 : index
    %c0_1 = arith.constant 0 : index
    %c0_2 = arith.constant 0 : index
    %3 = vector.load %arg2[%c0, %c0_1, %c0_2] : memref<1x16x8xf32, #tpu.memory_space<vmem>>, vector<1x16x8xf32>
    %c0_3 = arith.constant 0 : index
    %c0_4 = arith.constant 0 : index
    %c0_5 = arith.constant 0 : index
    %4 = vector.load %arg3[%c0_3, %c0_4, %c0_5] : memref<1x16x8xf32, #tpu.memory_space<vmem>>, vector<1x16x8xf32>
    %c0_6 = arith.constant 0 : index
    %c0_7 = arith.constant 0 : index
    %5 = vector.load %arg4[%c0_6, %c0_7] : memref<16x16xi8, #tpu.memory_space<vmem>>, vector<16x16xi8>
    %6 = arith.sitofp %5 : vector<16x16xi8> to vector<16x16xf32>
    "tpu.trace_start"() <{level = 10 : i32, message = "gld,gsd->gls"}> : () -> ()
    %cst = arith.constant dense<0.000000e+00> : vector<1x16x16xf32>
    %7 = tpu.matmul %3, %4, %cst {dimension_numbers = #tpu.dot_dimension_numbers<[2], [2], [1], [1], [0, 0, 0, 1, 1, 1], [0], [0]>} : vector<1x16x8xf32>, vector<1x16x8xf32>, vector<1x16x16xf32> -> vector<1x16x16xf32>
    "tpu.trace_stop"() : () -> ()
    %8 = vector.shape_cast %6 : vector<16x16xf32> to vector<1x16x16xf32>
    %cst_8 = arith.constant 0.000000e+00 : f32
    %9 = vector.broadcast %cst_8 : f32 to vector<1x16x16xf32>
    %10 = arith.cmpf ogt, %8, %9 : vector<1x16x16xf32>
    %c0_9 = arith.constant 0 : index
    %c0_10 = arith.constant 0 : index
    %11 = vector.load %arg6[%c0_9, %c0_10] : memref<1x16xf32, #tpu.memory_space<vmem>>, vector<1x16xf32>
    %cst_11 = arith.constant -1.000000e+30 : f32
    %12 = vector.broadcast %cst_11 : f32 to vector<1x16x16xf32>
    %13 = arith.select %10, %7, %12 : vector<1x16x16xi1>, vector<1x16x16xf32>
    %cst_12 = arith.constant dense<0xFF800000> : vector<1x16xf32>
    %14 = vector.multi_reduction <maximumf>, %13, %cst_12 [2] : vector<1x16x16xf32> to vector<1x16xf32>
    %15 = arith.maximumf %11, %14 : vector<1x16xf32>
    %c0_13 = arith.constant 0 : index
    %c0_14 = arith.constant 0 : index
    %16 = vector.load %arg6[%c0_13, %c0_14] : memref<1x16xf32, #tpu.memory_space<vmem>>, vector<1x16xf32>
    tpu.vector_store %arg6[%c0_13, %c0_14], %15 {strides = array<i32>} : memref<1x16xf32, #tpu.memory_space<vmem>>, vector<1x16xf32>,
    %c0_15 = arith.constant 0 : index
    %c0_16 = arith.constant 0 : index
    %17 = vector.load %arg7[%c0_15, %c0_16] : memref<1x16xf32, #tpu.memory_space<vmem>>, vector<1x16xf32>
    %18 = vector.shape_cast %6 : vector<16x16xf32> to vector<1x16x16xf32>
    %19 = arith.mulf %7, %18 : vector<1x16x16xf32>
    %cst_17 = arith.constant dense<0.000000e+00> : vector<1x16xf32>
    %20 = vector.multi_reduction <add>, %19, %cst_17 [2] : vector<1x16x16xf32> to vector<1x16xf32>
    %21 = arith.addf %17, %20 : vector<1x16xf32>
    %c0_18 = arith.constant 0 : index
    %c0_19 = arith.constant 0 : index
    %22 = vector.load %arg7[%c0_18, %c0_19] : memref<1x16xf32, #tpu.memory_space<vmem>>, vector<1x16xf32>
    tpu.vector_store %arg7[%c0_18, %c0_19], %21 {strides = array<i32>} : memref<1x16xf32, #tpu.memory_space<vmem>>, vector<1x16xf32>,
    %c0_i32_20 = arith.constant 0 : i32
    %23 = arith.cmpi eq, %arg1, %c0_i32_20 : i32
    %24 = arith.extui %23 : i1 to i32
    %c0_i32_21 = arith.constant 0 : i32
    %25 = arith.cmpi ne, %24, %c0_i32_21 : i32
    scf.if %25 {
      %c0_22 = arith.constant 0 : index
      %c0_23 = arith.constant 0 : index
      %26 = vector.load %arg6[%c0_22, %c0_23] : memref<1x16xf32, #tpu.memory_space<vmem>>, vector<1x16xf32>
      %c0_24 = arith.constant 0 : index
      %c0_25 = arith.constant 0 : index
      %27 = vector.load %arg7[%c0_24, %c0_25] : memref<1x16xf32, #tpu.memory_space<vmem>>, vector<1x16xf32>
      %cst_26 = arith.constant 6.250000e-02 : f32
      %28 = vector.broadcast %cst_26 : f32 to vector<1x16xf32>
      %29 = arith.mulf %27, %28 : vector<1x16xf32>
      %30 = arith.subf %26, %29 : vector<1x16xf32>
      %c0_27 = arith.constant 0 : index
      %c0_28 = arith.constant 0 : index
      %c0_29 = arith.constant 0 : index
      %31 = vector.load %arg5[%c0_27, %c0_28, %c0_29] : memref<1x1x16xf32, #tpu.memory_space<vmem>>, vector<1x1x16xf32>
      %32 = vector.shape_cast %31 : vector<1x1x16xf32> to vector<1x16xf32>
      %33 = vector.shape_cast %30 : vector<1x16xf32> to vector<1x1x16xf32>
      tpu.vector_store %arg5[%c0_27, %c0_28, %c0_29], %33 {strides = array<i32>} : memref<1x1x16xf32, #tpu.memory_space<vmem>>, vector<1x1x16xf32>,
    } else {
    }
    return
  }
  func.func @transform_0(%arg0: i32, %arg1: i32) -> (i32, i32, i32) {
    %c0_i32 = arith.constant 0 : i32
    %c0_i32_0 = arith.constant 0 : i32
    %c0_i32_1 = arith.constant 0 : i32
    return %arg0, %c0_i32, %c0_i32_0 : i32, i32, i32
  }
  func.func @transform_1(%arg0: i32, %arg1: i32) -> (i32, i32, i32) {
    %c0_i32 = arith.constant 0 : i32
    %c0_i32_0 = arith.constant 0 : i32
    return %arg0, %arg1, %c0_i32 : i32, i32, i32
  }
  func.func @transform_2(%arg0: i32, %arg1: i32) -> (i32, i32) {
    %c0_i32 = arith.constant 0 : i32
    %c0_i32_0 = arith.constant 0 : i32
    return %c0_i32, %arg1 : i32, i32
  }
  func.func @transform_3(%arg0: i32, %arg1: i32) -> (i32, i32, i32) {
    %c0_i32 = arith.constant 0 : i32
    %c0_i32_0 = arith.constant 0 : i32
    %c0_i32_1 = arith.constant 0 : i32
    return %arg0, %c0_i32, %c0_i32_0 : i32, i32, i32
  }
}

</mosaic_0001>

<llo_original>
// kernel: tpu_custom_call.1
$region0: #{tpu_custom_call.1}
  #allocation0 [shape = 'u32[]', space=smem, size = 0x4, offset = 0x4, fixed_abs, tag = 'smem constant byte address 0x4 - core index']
  #allocation1 [shape = 'u32[144,128]{1,0:T(1,128)}', space=vmem, size = 0x12000, scoped, tag = 'internal scratch']
  #allocation2 [shape = 'f32[1,16]{1,0:T(1,128)}', space=vmem, size = 0x200, scoped, tag = 'scratch operand']
  #allocation3 [shape = 'f32[1,16]{1,0:T(1,128)}', space=vmem, size = 0x200, scoped, tag = 'scratch operand']
  %s0 = inlined_call_operand.vmem [shape: f32[8,16,8], index: 0, kind: input, shape index: {}]
  %s1 = inlined_call_operand.vmem [shape: f32[8,16,8], index: 1, kind: input, shape index: {}]
  %s2 = inlined_call_operand.vmem [shape: s8[16,16], index: 2, kind: input, shape index: {}]
  %s3 = inlined_call_operand.hbm [shape: f32[8,1,16], index: 3, kind: output, shape index: {}]
  %s4 = sld [smem:[#allocation0]]
  $region53: #{tpu_custom_call.1} parent=0
    _
  %s6 = ssub.s32 1, %s4
  %s7 = scalar_select 0, %s6, %s4
  $region1: #{tpu_custom_call.1} parent=0
    #allocation4 [shape = 'u8[1024]{0}', space=vmem, size = 0x400, scoped, tag = 'output window, operand 0']
    #allocation5 [shape = 's32[2]{0}', space=sflag, size = 0x8, scoped, tag = 'scoped memory for tpu_custom_call.1']
    %8 = vsyncpa [#allocation5], 0
    %s9 = scalar_lea.sflag [#allocation5], 1
    %10 = vsyncpa %s9, 0
    loop: start=0, step=1, limit=10
    $region2: #{tpu_custom_call.1} parent=1 // loop_pre_header
      _
    $region3: #{tpu_custom_call.1} parent=1 // loop_header
      %s12 = sphi 0, %s16
      %p13 = scmp.ge.s32.totalorder %s12, 10
      %s19 = sphi 0, %s31
      %s20 = sphi 0, %s27
      %s21 = sphi 0, %s19
      %s22 = sphi 0, %s20
      %s23 = sphi 0, %s21
      %s24 = sphi 0, %s22
      %s34 = sphi 0, %s36
      %s37 = sphi 0, %s34
      %s38 = sphi 0, %s37
      %s54 = sphi 0, %s38
      %s62 = sphi 0, %s64
      %s65 = sphi 0, %s62
      %s66 = sphi 0, %s65
      %s82 = sphi 0, %s66
      %s88 = sphi 0, %s90
      %s91 = sphi 0, %s88
      %s92 = sphi 0, %s91
      %s108 = sphi 0, %s92
      %s114 = sphi 0, %s116
      %s117 = sphi 0, %s114
      %s118 = sphi 0, %s117
      %s134 = sphi 0, %s118
    $region4: #{tpu_custom_call.1} parent=1 // loop_header_branch
      %15 = sbr.rel (%p13) target = $region8
    $region5: #{tpu_custom_call.1} parent=1 // loop_body
      %s17 = ssub.s32 %s12, 1
      %s18 = ssub.s32 %s12, 2
      %s25 = sadd.s32 1, %s20
      %p26 = scmp.ge.s32.totalorder %s25, 1
      %s27 = scalar_select %p26, 0, %s25
      %s28 = sadd.s32 1, %s19
      %s29 = scalar_select %p26, %s28, %s19
      %p30 = scmp.ge.s32.totalorder %s29, 8
      %s31 = scalar_select %p30, 0, %s29
      %s32 = ssub.s32 %s19, %s31
      %p33 = scmp.eq.s32.totalorder %s32, 0
      %s35 = sadd.s32 %s34, 1
      %s36 = scalar_select %p33, %s34, %s35
      %p39 = pneg %p33
      %p40 = scmp.eq.s32.totalorder %s12, 7
      %p41 = por %p39, %p40
      %p42 = scmp.ne.s32.totalorder %s34, %s37
      %p43 = scmp.eq.s32.totalorder %s12, 0
      %p44 = por %p42, %p43
      %p45 = scmp.ne.s32.totalorder %s34, %s37
      %p46 = scmp.eq.s32.totalorder %s17, 7
      %p47 = por %p45, %p46
      %p48 = scmp.ne.s32.totalorder %s37, %s38
      %p49 = scmp.eq.s32.totalorder %s17, 0
      %p50 = por %p48, %p49
      %p51 = scmp.ne.s32.totalorder %s37, %s38
      %p52 = scmp.eq.s32.totalorder %s18, 7
      %p53 = por %p51, %p52
      %p55 = scmp.ne.s32.totalorder %s38, %s54
      %p56 = scmp.eq.s32.totalorder %s18, 0
      %p57 = por %p55, %p56
      %s58 = ssub.s32 %s19, %s31
      %s59 = ssub.s32 %s20, %s27
      %s60 = sor.u32 %s58, %s59
      %p61 = scmp.eq.s32.totalorder %s60, 0
      %s63 = sadd.s32 %s62, 1
      %s64 = scalar_select %p61, %s62, %s63
      %p67 = pneg %p61
      %p68 = scmp.eq.s32.totalorder %s12, 7
      %p69 = por %p67, %p68
      %p70 = scmp.ne.s32.totalorder %s62, %s65
      %p71 = scmp.eq.s32.totalorder %s12, 0
      %p72 = por %p70, %p71
      %p73 = scmp.ne.s32.totalorder %s62, %s65
      %p74 = scmp.eq.s32.totalorder %s17, 7
      %p75 = por %p73, %p74
      %p76 = scmp.ne.s32.totalorder %s65, %s66
      %p77 = scmp.eq.s32.totalorder %s17, 0
      %p78 = por %p76, %p77
      %p79 = scmp.ne.s32.totalorder %s65, %s66
      %p80 = scmp.eq.s32.totalorder %s18, 7
      %p81 = por %p79, %p80
      %p83 = scmp.ne.s32.totalorder %s66, %s82
      %p84 = scmp.eq.s32.totalorder %s18, 0
      %p85 = por %p83, %p84
      %s86 = ssub.s32 %s20, %s27
      %p87 = scmp.eq.s32.totalorder %s86, 0
      %s89 = sadd.s32 %s88, 1
      %s90 = scalar_select %p87, %s88, %s89
      %p93 = pneg %p87
      %p94 = scmp.eq.s32.totalorder %s12, 7
      %p95 = por %p93, %p94
      %p96 = scmp.ne.s32.totalorder %s88, %s91
      %p97 = scmp.eq.s32.totalorder %s12, 0
      %p98 = por %p96, %p97
      %p99 = scmp.ne.s32.totalorder %s88, %s91
      %p100 = scmp.eq.s32.totalorder %s17, 7
      %p101 = por %p99, %p100
      %p102 = scmp.ne.s32.totalorder %s91, %s92
      %p103 = scmp.eq.s32.totalorder %s17, 0
      %p104 = por %p102, %p103
      %p105 = scmp.ne.s32.totalorder %s91, %s92
      %p106 = scmp.eq.s32.totalorder %s18, 7
      %p107 = por %p105, %p106
      %p109 = scmp.ne.s32.totalorder %s92, %s108
      %p110 = scmp.eq.s32.totalorder %s18, 0
      %p111 = por %p109, %p110
      %s112 = ssub.s32 %s19, %s31
      %p113 = scmp.eq.s32.totalorder %s112, 0
      %s115 = sadd.s32 %s114, 1
      %s116 = scalar_select %p113, %s114, %s115
      %p119 = pneg %p113
      %p120 = scmp.eq.s32.totalorder %s12, 7
      %p121 = por %p119, %p120
      %p122 = scmp.ne.s32.totalorder %s114, %s117
      %p123 = scmp.eq.s32.totalorder %s12, 0
      %p124 = por %p122, %p123
      %p125 = scmp.ne.s32.totalorder %s114, %s117
      %p126 = scmp.eq.s32.totalorder %s17, 7
      %p127 = por %p125, %p126
      %p128 = scmp.ne.s32.totalorder %s117, %s118
      %p129 = scmp.eq.s32.totalorder %s17, 0
      %p130 = por %p128, %p129
      %p131 = scmp.ne.s32.totalorder %s117, %s118
      %p132 = scmp.eq.s32.totalorder %s18, 7
      %p133 = por %p131, %p132
      %p135 = scmp.ne.s32.totalorder %s118, %s134
      %p136 = scmp.eq.s32.totalorder %s18, 0
      %p137 = por %p135, %p136
      %p138 = scmp.le.s32.totalorder 1, %s12
      %p139 = scmp.lt.s32.totalorder %s12, 9
      %p140 = pnand %p138, %p139
      %p141 = pneg %p140
      // Predicated region
      $region9: #{tpu_custom_call.1} parent=5 // pred_check
        _
      $region10: #{tpu_custom_call.1} parent=5 // pred_check_branch
        %143 = sbr.rel (%p140) target = $region12
      $region11: #{tpu_custom_call.1} parent=5 // pred_region
        %s144 = ssub.s32 %s12, 1
        // Predicated region
        $region13: #{tpu_custom_call.1} parent=11 // pred_check
          %p145 = pneg %p104
        $region14: #{tpu_custom_call.1} parent=11 // pred_check_branch
          %147 = sbr.rel (%p145) target = $region16
        $region15: #{tpu_custom_call.1} parent=11 // pred_region
          %p148 = scmp.lt.s32.totalorder %s22, 0
          %s149 = scalar_select %p148, %s22, 0
          %s150 = smul.addr %s149, 2
          %s151 = scalar_lea.vmem %s2, %s150
        $region16: #{tpu_custom_call.1} parent=11 // pred_fallthru
          _
      $region12: #{tpu_custom_call.1} parent=5 // pred_fallthru
        _
      %p152 = scmp.lt.s32.totalorder %s12, 8
      // Predicated region
      $region17: #{tpu_custom_call.1} parent=5 // pred_check
        %p153 = pneg %p152
      $region18: #{tpu_custom_call.1} parent=5 // pred_check_branch
        %155 = sbr.rel (%p153) target = $region20
      $region19: #{tpu_custom_call.1} parent=5 // pred_region
        // Predicated region
        $region21: #{tpu_custom_call.1} parent=19 // pred_check
          %p156 = pneg %p44
        $region22: #{tpu_custom_call.1} parent=19 // pred_check_branch
          %158 = sbr.rel (%p156) target = $region24
        $region23: #{tpu_custom_call.1} parent=19 // pred_region
          %p159 = scmp.lt.s32.totalorder %s19, 7
          %s160 = scalar_select %p159, %s19, 7
          %s161 = smul.addr %s160, 2
          %s162 = smul.addr %s161, 8
          %s163 = scalar_lea.vmem %s0, %s162
        $region24: #{tpu_custom_call.1} parent=19 // pred_fallthru
          _
        // Predicated region
        $region25: #{tpu_custom_call.1} parent=19 // pred_check
          %p164 = pneg %p72
        $region26: #{tpu_custom_call.1} parent=19 // pred_check_branch
          %166 = sbr.rel (%p164) target = $region28
        $region27: #{tpu_custom_call.1} parent=19 // pred_region
          %s167 = smul.u32 2, %s20
          %p168 = scmp.lt.s32.totalorder %s19, 7
          %s169 = scalar_select %p168, %s19, 7
          %p170 = scmp.lt.s32.totalorder %s167, 1
          %s171 = scalar_select %p170, %s167, 1
          %s172 = smul.addr %s169, 2
          %s173 = sadd.s32 %s171, %s172
          %s174 = smul.addr %s173, 8
          %s175 = scalar_lea.vmem %s1, %s174
          %s176 = smul.u32 2, %s20
        $region28: #{tpu_custom_call.1} parent=19 // pred_fallthru
          _
      $region20: #{tpu_custom_call.1} parent=5 // pred_fallthru
        _
      %p177 = scmp.le.s32.totalorder 1, %s12
      %p178 = scmp.lt.s32.totalorder %s12, 9
      %p179 = pnand %p177, %p178
      %p180 = pneg %p179
      // Predicated region
      $region29: #{tpu_custom_call.1} parent=5 // pred_check
        _
      $region30: #{tpu_custom_call.1} parent=5 // pred_check_branch
        %182 = sbr.rel (%p179) target = $region32
      $region31: #{tpu_custom_call.1} parent=5 // pred_region
        %s183 = ssub.s32 %s12, 1
        %p184 = scmp.lt.s32.totalorder %s21, 7
        %s185 = scalar_select %p184, %s21, 7
        %s186 = smul.addr %s185, 2
        %s187 = smul.addr %s186, 8
        %s188 = scalar_lea.vmem %s0, %s187
        %p189 = pneg %p50
        %p190 = pneg %p47
        %s191 = smul.u32 2, %s22
        %p192 = scmp.lt.s32.totalorder %s21, 7
        %s193 = scalar_select %p192, %s21, 7
        %p194 = scmp.lt.s32.totalorder %s191, 1
        %s195 = scalar_select %p194, %s191, 1
        %s196 = smul.addr %s193, 2
        %s197 = sadd.s32 %s195, %s196
        %s198 = smul.addr %s197, 8
        %s199 = scalar_lea.vmem %s1, %s198
        %p200 = pneg %p78
        %p201 = pneg %p75
        %p202 = scmp.lt.s32.totalorder %s22, 0
        %s203 = scalar_select %p202, %s22, 0
        %s204 = smul.addr %s203, 2
        %s205 = scalar_lea.vmem %s2, %s204
        %p206 = pneg %p104
        %p207 = pneg %p101
        %p208 = pneg %p130
        %p209 = pneg %p127
        %s210 = sand.u32 %s117, 1
        %s211 = scalar_lea.sflag [#allocation5], %s210
        %s212 = sand.u32 %s117, 1
        %s213 = scalar_lea.vmem [#allocation4], %s212
        %p214 = scmp.lt.s32.totalorder %s21, 7
        %s215 = scalar_select %p214, %s21, 7
        %s216 = smul.addr %s215, 2
        %s217 = smul.addr %s216, 8
        %s218 = scalar_lea.vmem %s0, %s217
        %s219 = smul.u32 2, %s22
        %p220 = scmp.lt.s32.totalorder %s21, 7
        %s221 = scalar_select %p220, %s21, 7
        %p222 = scmp.lt.s32.totalorder %s219, 1
        %s223 = scalar_select %p222, %s219, 1
        %s224 = smul.addr %s221, 2
        %s225 = sadd.s32 %s223, %s224
        %s226 = smul.addr %s225, 8
        %s227 = scalar_lea.vmem %s1, %s226
        %s228 = smul.u32 2, %s22
        %p229 = scmp.lt.s32.totalorder %s22, 0
        %s230 = scalar_select %p229, %s22, 0
        %s231 = smul.addr %s230, 2
        %s232 = scalar_lea.vmem %s2, %s231
        %p233 = scmp.eq.s32.totalorder %s22, 0
        // Predicated region
        $region33: #{tpu_custom_call.1} parent=31 // pred_check
          %p234 = pneg %p233
        $region34: #{tpu_custom_call.1} parent=31 // pred_check_branch
          %236 = sbr.rel (%p234) target = $region36
        $region35: #{tpu_custom_call.1} parent=31 // pred_region
          %vm237 = vcmask 122880
          %238 = vst.msk [vmem:[#allocation2] sm:$0x1] %vm237, -1e+30
          %239 = vst.msk [vmem:[#allocation3] sm:$0x1] %vm237, 0.0
        $region36: #{tpu_custom_call.1} parent=31 // pred_fallthru
          _
        %v240 = vld [vmem:[%s218] sm:$0xff]
        %v241 = vld [vmem:[%s218 + $0x8] sm:$0xff]
        %v242 = vld [vmem:[%s227] sm:$0xff]
        %v243 = vld [vmem:[%s227 + $0x8] sm:$0xff]
        %v244 = vld [vmem:[%s232] sm:$0x3]
        %v245 = vld [vmem:[%s232 + $0x2] sm:$0x3]
        %v246 = vunpack.c.0.s8 %v244
        %v247 = vunpack.c.0.s8 %v245
        %v248 = vcvt.s32.f32 %v246
        %v249 = vcvt.s32.f32 %v247
        %vm250 = vcmask 64512
        %v252 = vsel %vm250, %v240, 0
        %v255 = vsel %vm250, %v241, 0
        %v258 = vsel %vm250, %v242, 0
        %v261 = vsel %vm250, %v243, 0
        %263 = vmatprep.subr.mxu0 0.0
        %264 = vmatpush1.xpose.msra.mxu0 0.0
        %265 = vmatprep.subr.mxu0 0.0
        %266 = vmatpush1.xpose.msra.mxu0 0.0
        %267 = vmatprep.subr.mxu0 0.0
        %268 = vmatpush1.xpose.msra.mxu0 0.0
        %269 = vmatprep.subr.mxu0 0.0
        %270 = vmatpush1.xpose.msra.mxu0 0.0
        %271 = vmatprep.subr.mxu0 0.0
        %272 = vmatpush1.xpose.msra.mxu0 0.0
        %273 = vmatprep.subr.mxu0 0.0
        %274 = vmatpush1.xpose.msra.mxu0 0.0
        %275 = vmatprep.subr.mxu0 0.0
        %276 = vmatpush1.xpose.msra.mxu0 0.0
        %277 = vmatprep.subr.mxu0 0.0
        %278 = vmatpush1.xpose.msra.mxu0 0.0
        %279 = vmatprep.subr.mxu0 0.0
        %280 = vmatpush1.xpose.msra.mxu0 0.0
        %281 = vmatprep.subr.mxu0 0.0
        %282 = vmatpush1.xpose.msra.mxu0 0.0
        %283 = vmatprep.subr.mxu0 0.0
        %284 = vmatpush1.xpose.msra.mxu0 0.0
        %285 = vmatprep.subr.mxu0 0.0
        %286 = vmatpush1.xpose.msra.mxu0 0.0
        %287 = vmatprep.subr.mxu0 0.0
        %288 = vmatpush1.xpose.msra.mxu0 0.0
        %289 = vmatprep.subr.mxu0 0.0
        %290 = vmatpush1.xpose.msra.mxu0 0.0
        %291 = vmatprep.subr.mxu0 0.0
        %292 = vmatpush1.xpose.msra.mxu0 %v261
        %293 = vmatprep.subr.mxu0 0.0
        %294 = vmatpush1.xpose.msra.mxu0 %v258
        %295 = vmatprep.subr.mxu0 0.0
        %296 = vmatpush2.xpose.msra.mxu0 0.0
        %297 = vmatprep.subr.mxu0 0.0
        %298 = vmatpush2.xpose.msra.mxu0 0.0
        %299 = vmatprep.subr.mxu0 0.0
        %300 = vmatpush2.xpose.msra.mxu0 0.0
        %301 = vmatprep.subr.mxu0 0.0
        %302 = vmatpush2.xpose.msra.mxu0 0.0
        %303 = vmatprep.subr.mxu0 0.0
        %304 = vmatpush2.xpose.msra.mxu0 0.0
        %305 = vmatprep.subr.mxu0 0.0
        %306 = vmatpush2.xpose.msra.mxu0 0.0
        %307 = vmatprep.subr.mxu0 0.0
        %308 = vmatpush2.xpose.msra.mxu0 0.0
        %309 = vmatprep.subr.mxu0 0.0
        %310 = vmatpush2.xpose.msra.mxu0 0.0
        %311 = vmatprep.subr.mxu0 0.0
        %312 = vmatpush2.xpose.msra.mxu0 0.0
        %313 = vmatprep.subr.mxu0 0.0
        %314 = vmatpush2.xpose.msra.mxu0 0.0
        %315 = vmatprep.subr.mxu0 0.0
        %316 = vmatpush2.xpose.msra.mxu0 0.0
        %317 = vmatprep.subr.mxu0 0.0
        %318 = vmatpush2.xpose.msra.mxu0 0.0
        %319 = vmatprep.subr.mxu0 0.0
        %320 = vmatpush2.xpose.msra.mxu0 0.0
        %321 = vmatprep.subr.mxu0 0.0
        %322 = vmatpush2.xpose.msra.mxu0 0.0
        %323 = vmatprep.subr.mxu0 0.0
        %324 = vmatpush2.xpose.msra.mxu0 0.0
        %325 = vmatprep.subr.mxu0 0.0
        %326 = vmatpush2.xpose.msra.mxu0 0.0
        %327 = vmatprep.mubr.f32.mxu0 0.0
        %328 = vmatmul.mubr.f32.gmra.mxu0 %v252
        %v329 = vpop.f32.mrf.mxu0
        %v330 = vadd.f32 0.0, %v329
        %v331 = vpop.f32.mrf.mxu0
        %332 = vmatprep.mubr.f32.mxu0 0.0
        %333 = vmatmul.mubr.f32.gmra.mxu0 %v255
        %v334 = vpop.f32.mrf.mxu0
        %v335 = vadd.f32 0.0, %v334
        %v336 = vpop.f32.mrf.mxu0
        %337 = vdwg.mxu0
        %vm338 = vcmp.gt.f32.partialorder %v248, 0.0
        %vm339 = vcmp.gt.f32.partialorder %v249, 0.0
        %v340 = vld [vmem:[#allocation2] sm:$0x1]
        %v341 = vsel %vm338, %v330, -1e+30
        %v342 = vsel %vm339, %v335, -1e+30
        %vm343 = vcmask 130048
        %v344 = vsel %vm343, %v341, -inf
        %345 = vmax.xlane.f32.xlu0 %v344
        %v346 = vpop.xlane.xlu0 %345
        %v347 = vsel %vm343, %v342, -inf
        %348 = vmax.xlane.f32.xlu0 %v347
        %v349 = vpop.xlane.xlu0 %348
        %v352 = vlaneseq
        %v353 = vshrl.u32 %v352, 7
        %v354 = vsub.s32 0, %v353
        %v355 = vrot.slane %v346, %v354
        %v356 = vlaneseq
        %v357 = vshrl.u32 %v356, 7
        %v358 = vsub.s32 1, %v357
        %v359 = vrot.slane %v346, %v358
        %v360 = vlaneseq
        %v361 = vshrl.u32 %v360, 7
        %v362 = vsub.s32 2, %v361
        %v363 = vrot.slane %v346, %v362
        %v364 = vlaneseq
        %v365 = vshrl.u32 %v364, 7
        %v366 = vsub.s32 3, %v365
        %v367 = vrot.slane %v346, %v366
        %v368 = vlaneseq
        %v369 = vshrl.u32 %v368, 7
        %v370 = vsub.s32 4, %v369
        %v371 = vrot.slane %v346, %v370
        %v372 = vlaneseq
        %v373 = vshrl.u32 %v372, 7
        %v374 = vsub.s32 5, %v373
        %v375 = vrot.slane %v346, %v374
        %v376 = vlaneseq
        %v377 = vshrl.u32 %v376, 7
        %v378 = vsub.s32 6, %v377
        %v379 = vrot.slane %v346, %v378
        %v380 = vlaneseq
        %v381 = vshrl.u32 %v380, 7
        %v382 = vsub.s32 7, %v381
        %v383 = vrot.slane %v346, %v382
        %v384 = vlaneseq
        %v385 = vshrl.u32 %v384, 7
        %v386 = vsub.s32 0, %v385
        %v387 = vrot.slane %v349, %v386
        %v388 = vlaneseq
        %v389 = vshrl.u32 %v388, 7
        %v390 = vsub.s32 1, %v389
        %v391 = vrot.slane %v349, %v390
        %v392 = vlaneseq
        %v393 = vshrl.u32 %v392, 7
        %v394 = vsub.s32 2, %v393
        %v395 = vrot.slane %v349, %v394
        %v396 = vlaneseq
        %v397 = vshrl.u32 %v396, 7
        %v398 = vsub.s32 3, %v397
        %v399 = vrot.slane %v349, %v398
        %v400 = vlaneseq
        %v401 = vshrl.u32 %v400, 7
        %v402 = vsub.s32 4, %v401
        %v403 = vrot.slane %v349, %v402
        %v404 = vlaneseq
        %v405 = vshrl.u32 %v404, 7
        %v406 = vsub.s32 5, %v405
        %v407 = vrot.slane %v349, %v406
        %v408 = vlaneseq
        %v409 = vshrl.u32 %v408, 7
        %v410 = vsub.s32 6, %v409
        %v411 = vrot.slane %v349, %v410
        %v412 = vlaneseq
        %v413 = vshrl.u32 %v412, 7
        %v414 = vsub.s32 7, %v413
        %v415 = vrot.slane %v349, %v414
        %v416 = vcombine.low %v355, %v359
        %v417 = vcombine.low %v363, %v367
        %v418 = vcombine.low %v371, %v375
        %v419 = vcombine.low %v379, %v383
        %v421 = vunpack.c.l.s4 1966171168
        %v422 = vunpack.c.0.s8 %v421
        %v423 = vlaneseq
        %v424 = vshrl.u32 %v423, 7
        %v425 = vsub.s32 %v422, %v424
        %v426 = vrot.slane %v416, %v425
        %v428 = vunpack.c.l.s4 1966171168
        %v429 = vunpack.c.0.s8 %v428
        %v430 = vlaneseq
        %v431 = vshrl.u32 %v430, 7
        %v432 = vsub.s32 %v429, %v431
        %v433 = vrot.slane %v417, %v432
        %v435 = vunpack.c.l.s4 1966171168
        %v436 = vunpack.c.0.s8 %v435
        %v437 = vlaneseq
        %v438 = vshrl.u32 %v437, 7
        %v439 = vsub.s32 %v436, %v438
        %v440 = vrot.slane %v418, %v439
        %v442 = vunpack.c.l.s4 1966171168
        %v443 = vunpack.c.0.s8 %v442
        %v444 = vlaneseq
        %v445 = vshrl.u32 %v444, 7
        %v446 = vsub.s32 %v443, %v445
        %v447 = vrot.slane %v419, %v446
        %v448 = vcombine.low %v426, %v433
        %v449 = vcombine.low %v440, %v447
        %v451 = vunpack.c.l.s4 1966171168
        %v452 = vunpack.c.0.s8 %v451
        %v453 = vlaneseq
        %v454 = vshrl.u32 %v453, 7
        %v455 = vsub.s32 %v452, %v454
        %v456 = vrot.slane %v448, %v455
        %v458 = vunpack.c.l.s4 1966171168
        %v459 = vunpack.c.0.s8 %v458
        %v460 = vlaneseq
        %v461 = vshrl.u32 %v460, 7
        %v462 = vsub.s32 %v459, %v461
        %v463 = vrot.slane %v449, %v462
        %v464 = vcombine.low %v456, %v463
        %v465 = vcombine.low %v387, %v391
        %v466 = vcombine.low %v395, %v399
        %v467 = vcombine.low %v403, %v407
        %v468 = vcombine.low %v411, %v415
        %v470 = vunpack.c.l.s4 1966171168
        %v471 = vunpack.c.0.s8 %v470
        %v472 = vlaneseq
        %v473 = vshrl.u32 %v472, 7
        %v474 = vsub.s32 %v471, %v473
        %v475 = vrot.slane %v465, %v474
        %v477 = vunpack.c.l.s4 1966171168
        %v478 = vunpack.c.0.s8 %v477
        %v479 = vlaneseq
        %v480 = vshrl.u32 %v479, 7
        %v481 = vsub.s32 %v478, %v480
        %v482 = vrot.slane %v466, %v481
        %v484 = vunpack.c.l.s4 1966171168
        %v485 = vunpack.c.0.s8 %v484
        %v486 = vlaneseq
        %v487 = vshrl.u32 %v486, 7
        %v488 = vsub.s32 %v485, %v487
        %v489 = vrot.slane %v467, %v488
        %v491 = vunpack.c.l.s4 1966171168
        %v492 = vunpack.c.0.s8 %v491
        %v493 = vlaneseq
        %v494 = vshrl.u32 %v493, 7
        %v495 = vsub.s32 %v492, %v494
        %v496 = vrot.slane %v468, %v495
        %v497 = vcombine.low %v475, %v482
        %v498 = vcombine.low %v489, %v496
        %v500 = vunpack.c.l.s4 1966171168
        %v501 = vunpack.c.0.s8 %v500
        %v502 = vlaneseq
        %v503 = vshrl.u32 %v502, 7
        %v504 = vsub.s32 %v501, %v503
        %v505 = vrot.slane %v497, %v504
        %v507 = vunpack.c.l.s4 1966171168
        %v508 = vunpack.c.0.s8 %v507
        %v509 = vlaneseq
        %v510 = vshrl.u32 %v509, 7
        %v511 = vsub.s32 %v508, %v510
        %v512 = vrot.slane %v498, %v511
        %v513 = vcombine.low %v505, %v512
        %514 = vset.pattern.permute.xlu0 0
        %515 = vperm.xlu0 %514, %v464
        %v516 = vpop.permute.xlu0 %515
        %517 = vset.pattern.permute.xlu0 0
        %518 = vperm.xlu0 %517, %v513
        %v519 = vpop.permute.xlu0 %518
        %v520 = vlaneseq
        %v521 = vand.u32 %v520, 127
        %v522 = vlaneseq
        %v523 = vshrl.u32 %v522, 7
        %v524 = vsub.s32 %v521, %v523
        %v525 = vrot.slane %v516, %v524
        %v526 = vadd.s32 %v521, 4294967288
        %v527 = vlaneseq
        %v528 = vshrl.u32 %v527, 7
        %v529 = vsub.s32 %v526, %v528
        %v530 = vrot.slane %v519, %v529
        %vm531 = vcmask 130112
        %v532 = vsel %vm531, %v530, %v525
        %v534 = vunpack.c.l.s4 1966171168
        %v535 = vunpack.c.0.s8 %v534
        %v536 = vlaneseq
        %v537 = vshrl.u32 %v536, 7
        %v538 = vsub.s32 %v535, %v537
        %v539 = vrot.slane %v532, %v538
        %v541 = vunpack.c.l.s4 1966171168
        %v542 = vunpack.c.0.s8 %v541
        %v543 = vlaneseq
        %v544 = vshrl.u32 %v543, 7
        %v545 = vsub.s32 %v542, %v544
        %v546 = vrot.slane %v539, %v545
        %v548 = vmax.f32 %v340, %v546
        %vm549 = vcmask 122880
        %550 = vst.msk [vmem:[#allocation2] sm:$0x1] %vm549, %v548
        %v551 = vld [vmem:[#allocation3] sm:$0x1]
        %v552 = vmul.f32 %v330, %v248
        %v553 = vmul.f32 %v335, %v249
        %v554 = vsel %vm343, %v552, 0.0
        %555 = vadd.xlane.f32.xlu0 %v554
        %v556 = vpop.xlane.xlu0 %555
        %v557 = vsel %vm343, %v553, 0.0
        %558 = vadd.xlane.f32.xlu0 %v557
        %v559 = vpop.xlane.xlu0 %558
        %v562 = vlaneseq
        %v563 = vshrl.u32 %v562, 7
        %v564 = vsub.s32 0, %v563
        %v565 = vrot.slane %v556, %v564
        %v566 = vlaneseq
        %v567 = vshrl.u32 %v566, 7
        %v568 = vsub.s32 1, %v567
        %v569 = vrot.slane %v556, %v568
        %v570 = vlaneseq
        %v571 = vshrl.u32 %v570, 7
        %v572 = vsub.s32 2, %v571
        %v573 = vrot.slane %v556, %v572
        %v574 = vlaneseq
        %v575 = vshrl.u32 %v574, 7
        %v576 = vsub.s32 3, %v575
        %v577 = vrot.slane %v556, %v576
        %v578 = vlaneseq
        %v579 = vshrl.u32 %v578, 7
        %v580 = vsub.s32 4, %v579
        %v581 = vrot.slane %v556, %v580
        %v582 = vlaneseq
        %v583 = vshrl.u32 %v582, 7
        %v584 = vsub.s32 5, %v583
        %v585 = vrot.slane %v556, %v584
        %v586 = vlaneseq
        %v587 = vshrl.u32 %v586, 7
        %v588 = vsub.s32 6, %v587
        %v589 = vrot.slane %v556, %v588
        %v590 = vlaneseq
        %v591 = vshrl.u32 %v590, 7
        %v592 = vsub.s32 7, %v591
        %v593 = vrot.slane %v556, %v592
        %v594 = vlaneseq
        %v595 = vshrl.u32 %v594, 7
        %v596 = vsub.s32 0, %v595
        %v597 = vrot.slane %v559, %v596
        %v598 = vlaneseq
        %v599 = vshrl.u32 %v598, 7
        %v600 = vsub.s32 1, %v599
        %v601 = vrot.slane %v559, %v600
        %v602 = vlaneseq
        %v603 = vshrl.u32 %v602, 7
        %v604 = vsub.s32 2, %v603
        %v605 = vrot.slane %v559, %v604
        %v606 = vlaneseq
        %v607 = vshrl.u32 %v606, 7
        %v608 = vsub.s32 3, %v607
        %v609 = vrot.slane %v559, %v608
        %v610 = vlaneseq
        %v611 = vshrl.u32 %v610, 7
        %v612 = vsub.s32 4, %v611
        %v613 = vrot.slane %v559, %v612
        %v614 = vlaneseq
        %v615 = vshrl.u32 %v614, 7
        %v616 = vsub.s32 5, %v615
        %v617 = vrot.slane %v559, %v616
        %v618 = vlaneseq
        %v619 = vshrl.u32 %v618, 7
        %v620 = vsub.s32 6, %v619
        %v621 = vrot.slane %v559, %v620
        %v622 = vlaneseq
        %v623 = vshrl.u32 %v622, 7
        %v624 = vsub.s32 7, %v623
        %v625 = vrot.slane %v559, %v624
        %v626 = vcombine.low %v565, %v569
        %v627 = vcombine.low %v573, %v577
        %v628 = vcombine.low %v581, %v585
        %v629 = vcombine.low %v589, %v593
        %v631 = vunpack.c.l.s4 1966171168
        %v632 = vunpack.c.0.s8 %v631
        %v633 = vlaneseq
        %v634 = vshrl.u32 %v633, 7
        %v635 = vsub.s32 %v632, %v634
        %v636 = vrot.slane %v626, %v635
        %v638 = vunpack.c.l.s4 1966171168
        %v639 = vunpack.c.0.s8 %v638
        %v640 = vlaneseq
        %v641 = vshrl.u32 %v640, 7
        %v642 = vsub.s32 %v639, %v641
        %v643 = vrot.slane %v627, %v642
        %v645 = vunpack.c.l.s4 1966171168
        %v646 = vunpack.c.0.s8 %v645
        %v647 = vlaneseq
        %v648 = vshrl.u32 %v647, 7
        %v649 = vsub.s32 %v646, %v648
        %v650 = vrot.slane %v628, %v649
        %v652 = vunpack.c.l.s4 1966171168
        %v653 = vunpack.c.0.s8 %v652
        %v654 = vlaneseq
        %v655 = vshrl.u32 %v654, 7
        %v656 = vsub.s32 %v653, %v655
        %v657 = vrot.slane %v629, %v656
        %v658 = vcombine.low %v636, %v643
        %v659 = vcombine.low %v650, %v657
        %v661 = vunpack.c.l.s4 1966171168
        %v662 = vunpack.c.0.s8 %v661
        %v663 = vlaneseq
        %v664 = vshrl.u32 %v663, 7
        %v665 = vsub.s32 %v662, %v664
        %v666 = vrot.slane %v658, %v665
        %v668 = vunpack.c.l.s4 1966171168
        %v669 = vunpack.c.0.s8 %v668
        %v670 = vlaneseq
        %v671 = vshrl.u32 %v670, 7
        %v672 = vsub.s32 %v669, %v671
        %v673 = vrot.slane %v659, %v672
        %v674 = vcombine.low %v666, %v673
        %v675 = vcombine.low %v597, %v601
        %v676 = vcombine.low %v605, %v609
        %v677 = vcombine.low %v613, %v617
        %v678 = vcombine.low %v621, %v625
        %v680 = vunpack.c.l.s4 1966171168
        %v681 = vunpack.c.0.s8 %v680
        %v682 = vlaneseq
        %v683 = vshrl.u32 %v682, 7
        %v684 = vsub.s32 %v681, %v683
        %v685 = vrot.slane %v675, %v684
        %v687 = vunpack.c.l.s4 1966171168
        %v688 = vunpack.c.0.s8 %v687
        %v689 = vlaneseq
        %v690 = vshrl.u32 %v689, 7
        %v691 = vsub.s32 %v688, %v690
        %v692 = vrot.slane %v676, %v691
        %v694 = vunpack.c.l.s4 1966171168
        %v695 = vunpack.c.0.s8 %v694
        %v696 = vlaneseq
        %v697 = vshrl.u32 %v696, 7
        %v698 = vsub.s32 %v695, %v697
        %v699 = vrot.slane %v677, %v698
        %v701 = vunpack.c.l.s4 1966171168
        %v702 = vunpack.c.0.s8 %v701
        %v703 = vlaneseq
        %v704 = vshrl.u32 %v703, 7
        %v705 = vsub.s32 %v702, %v704
        %v706 = vrot.slane %v678, %v705
        %v707 = vcombine.low %v685, %v692
        %v708 = vcombine.low %v699, %v706
        %v710 = vunpack.c.l.s4 1966171168
        %v711 = vunpack.c.0.s8 %v710
        %v712 = vlaneseq
        %v713 = vshrl.u32 %v712, 7
        %v714 = vsub.s32 %v711, %v713
        %v715 = vrot.slane %v707, %v714
        %v717 = vunpack.c.l.s4 1966171168
        %v718 = vunpack.c.0.s8 %v717
        %v719 = vlaneseq
        %v720 = vshrl.u32 %v719, 7
        %v721 = vsub.s32 %v718, %v720
        %v722 = vrot.slane %v708, %v721
        %v723 = vcombine.low %v715, %v722
        %724 = vset.pattern.permute.xlu0 0
        %725 = vperm.xlu0 %724, %v674
        %v726 = vpop.permute.xlu0 %725
        %727 = vset.pattern.permute.xlu0 0
        %728 = vperm.xlu0 %727, %v723
        %v729 = vpop.permute.xlu0 %728
        %v730 = vlaneseq
        %v731 = vshrl.u32 %v730, 7
        %v732 = vsub.s32 %v521, %v731
        %v733 = vrot.slane %v726, %v732
        %v734 = vlaneseq
        %v735 = vshrl.u32 %v734, 7
        %v736 = vsub.s32 %v526, %v735
        %v737 = vrot.slane %v729, %v736
        %v738 = vsel %vm531, %v737, %v733
        %v740 = vunpack.c.l.s4 1966171168
        %v741 = vunpack.c.0.s8 %v740
        %v742 = vlaneseq
        %v743 = vshrl.u32 %v742, 7
        %v744 = vsub.s32 %v741, %v743
        %v745 = vrot.slane %v738, %v744
        %v747 = vunpack.c.l.s4 1966171168
        %v748 = vunpack.c.0.s8 %v747
        %v749 = vlaneseq
        %v750 = vshrl.u32 %v749, 7
        %v751 = vsub.s32 %v748, %v750
        %v752 = vrot.slane %v745, %v751
        %v754 = vadd.f32 %v551, %v752
        %755 = vst.msk [vmem:[#allocation3] sm:$0x1] %vm549, %v754
        // Predicated region
        $region37: #{tpu_custom_call.1} parent=31 // pred_check
          %p756 = pneg %p233
        $region38: #{tpu_custom_call.1} parent=31 // pred_check_branch
          %758 = sbr.rel (%p756) target = $region40
        $region39: #{tpu_custom_call.1} parent=31 // pred_region
          %v759 = vld [vmem:[#allocation2] sm:$0x1]
          %v760 = vld [vmem:[#allocation3] sm:$0x1]
          %v761 = vmul.f32 %v760, 0.0625
          %v762 = vsub.f32 %v759, %v761
          %763 = vst.msk [vmem:[%s213] sm:$0x1] %vm549, %v762
        $region40: #{tpu_custom_call.1} parent=31 // pred_fallthru
          _
        %s764 = sand.u32 %s117, 1
        %s765 = scalar_lea.sflag [#allocation5], %s764
        %s766 = sand.u32 %s117, 1
        %s767 = scalar_lea.vmem [#allocation4], %s766
        // Predicated region
        $region41: #{tpu_custom_call.1} parent=31 // pred_check
          %p768 = pneg %p127
        $region42: #{tpu_custom_call.1} parent=31 // pred_check_branch
          %770 = sbr.rel (%p768) target = $region44
        $region43: #{tpu_custom_call.1} parent=31 // pred_region
          %s772 = ssub.s32 16, 16
          %773 = vsyncadd %s765, %s772
          %s774 = smul.addr %s21, 16
          %s775 = scalar_lea.hbm %s3, %s774
          %s777 = sshll.u32 %s767, 4
          %s778 = int_to_ptr.vmem [resolvable:$true] %s777
          %780 = dma.vmem_to_hbm [thread:$0]  %s778, 16, %s775, %s765
        $region44: #{tpu_custom_call.1} parent=31 // pred_fallthru
          _
      $region32: #{tpu_custom_call.1} parent=5 // pred_fallthru
        _
      %p781 = scmp.le.s32.totalorder 2, %s12
      // Predicated region
      $region45: #{tpu_custom_call.1} parent=5 // pred_check
        %p782 = pneg %p781
      $region46: #{tpu_custom_call.1} parent=5 // pred_check_branch
        %784 = sbr.rel (%p782) target = $region48
      $region47: #{tpu_custom_call.1} parent=5 // pred_region
        %s785 = ssub.s32 %s12, 2
        // Predicated region
        $region49: #{tpu_custom_call.1} parent=47 // pred_check
          %p786 = pneg %p133
        $region50: #{tpu_custom_call.1} parent=47 // pred_check_branch
          %788 = sbr.rel (%p786) target = $region52
        $region51: #{tpu_custom_call.1} parent=47 // pred_region
          %s789 = sand.u32 %s118, 1
          %s790 = scalar_lea.sflag [#allocation5], %s789
          %s791 = sand.u32 %s118, 1
          %s792 = scalar_lea.vmem [#allocation4], %s791
          %793 = dma.done %s790, 16
        $region52: #{tpu_custom_call.1} parent=47 // pred_fallthru
          _
      $region48: #{tpu_custom_call.1} parent=5 // pred_fallthru
        _
    $region6: #{tpu_custom_call.1} parent=1 // loop_footer
      %s16 = sadd.s32 1, %s12
    $region7: #{tpu_custom_call.1} parent=1 // loop_footer_branch
      %11 = sbr.rel target = $region3
    $region8: #{tpu_custom_call.1} parent=1 // loop_exit
      _
    %794 = vsyncpa [#allocation5], 1
    %s795 = scalar_lea.sflag [#allocation5], 1
    %796 = vsyncpa %s795, 1

</llo_original>
